<compile_context>
chip_gen: v7x
topology: tpu7x:2x2x1
jax: 0.10.0
libtpu: 0.0.40
codegen_flags: <defaults>
</compile_context>

<pallas_src>
import jax
import jax.numpy as jnp
from jax.experimental import pallas as pl
from jax.experimental.pallas import tpu as pltpu


def _round_up(a: int, m: int) -> int:
    return ((a + m - 1) // m) * m


def _choose_tile(n: int, tile_n: int) -> int:
    """Pick the batch tile. Multiples of 256 for multi-block grids (8/128
    aligned, MXU friendly); the exact N for a single block; split a large
    single-block batch so both v7x TensorCores get a grid step each."""
    tile_n = max(256, (tile_n // 256) * 256)
    if n > tile_n:
        return tile_n
    if n >= 1024:
        half = _round_up(pl.cdiv(n, 2), 256)
        if half < n:
            return half
    return n


def _disc_kernel(x_ref, w1_ref, w2_ref, wl_ref, b_ref, out_ref):
    cd = w1_ref.dtype
    # Hidden layer 1 (no bias) + ReLU.  f32 accumulation on the MXU.
    h = jnp.dot(x_ref[...].astype(cd), w1_ref[...],
                preferred_element_type=jnp.float32)
    h = jnp.maximum(h, 0.0).astype(cd)
    # Hidden layer 2 (no bias) + ReLU.
    h = jnp.dot(h, w2_ref[...], preferred_element_type=jnp.float32)
    h = jnp.maximum(h, 0.0).astype(cd)
    # Logit layer: only the 2 real output columns are computed and stored.
    y = jnp.dot(h, wl_ref[...], preferred_element_type=jnp.float32)
    out_ref[...] = (y + b_ref[...]).astype(out_ref.dtype)


def prepare_params(w1, w2, wl, b, *, compute_dtype=jnp.bfloat16):
    """One-time parameter prep (hoisted out of the per-call forward).

    w1: (inputDim, H); w2: (H, H); wl: (H, 2); b: (2,) or (1, 2).
    Pads the hidden dim to a multiple of 128 (lane-dense intermediates) and
    casts weights to the compute dtype.  Zero padding is semantics-preserving.
    """
    in_dim, h = w1.shape
    n_out = wl.shape[1]
    hp = _round_up(h, 128)
    cd = compute_dtype
    w1_p = jnp.zeros((in_dim, hp), cd).at[:, :h].set(w1.astype(cd))
    w2_p = jnp.zeros((hp, hp), cd).at[:h, :h].set(w2.astype(cd))
    wl_p = jnp.zeros((hp, n_out), cd).at[:h, :].set(wl.astype(cd))
    b_p = b.reshape(1, n_out).astype(jnp.float32)
    return w1_p, w2_p, wl_p, b_p


def discriminator_forward(x, w1_p, w2_p, wl_p, b_p, *, tile_n=2048):
    """x: (N, inputDim); prepped params from prepare_params().
    Returns float32 logits of shape (N, 2)."""
    n, in_dim = x.shape
    hp = w1_p.shape[1]
    n_out = wl_p.shape[1]

    tile = _choose_tile(n, tile_n)
    grid = (pl.cdiv(n, tile),)

    flops = 2 * n * (in_dim * hp + hp * hp + hp * n_out)
    bytes_accessed = (
        x.size * x.dtype.itemsize
        + w1_p.size * w1_p.dtype.itemsize
        + w2_p.size * w2_p.dtype.itemsize
        + wl_p.size * wl_p.dtype.itemsize
        + b_p.size * 4
        + n * n_out * 4)

    return pl.pallas_call(
        _disc_kernel,
        out_shape=jax.ShapeDtypeStruct((n, n_out), jnp.float32),
        grid_spec=pltpu.PrefetchScalarGridSpec(
            num_scalar_prefetch=0,
            grid=grid,
            in_specs=[
                pl.BlockSpec((tile, in_dim), lambda i: (i, 0)),   # x tile
                pl.BlockSpec(w1_p.shape, lambda i: (0, 0)),       # resident W1
                pl.BlockSpec(w2_p.shape, lambda i: (0, 0)),       # resident W2
                pl.BlockSpec(wl_p.shape, lambda i: (0, 0)),       # resident Wl
                pl.BlockSpec(b_p.shape, lambda i: (0, 0)),        # bias
            ],
            out_specs=pl.BlockSpec((tile, n_out), lambda i: (i, 0)),
        ),
        compiler_params=pltpu.CompilerParams(
            dimension_semantics=("parallel",)),
        cost_estimate=pl.CostEstimate(
            flops=flops, transcendentals=0, bytes_accessed=bytes_accessed),
    )(x, w1_p, w2_p, wl_p, b_p)


def init_params(key, input_dim, hidden_dim):
    """Kaiming-normal (relu) init like the PyTorch module; bias = 0.

    PyTorch Linear weight is (out, in); kaiming_normal_ uses fan_in = in.
    Generated as (out, in) then transposed to (in, out) for the kernel."""
    k1, k2, k3 = jax.random.split(key, 3)

    def kaiming(k, out_f, in_f):
        std = (2.0 / in_f) ** 0.5
        w = jax.random.normal(k, (out_f, in_f), dtype=jnp.float32) * std
        return w.T  # (in, out)

    w1 = kaiming(k1, hidden_dim, input_dim)
    w2 = kaiming(k2, hidden_dim, hidden_dim)
    wl = kaiming(k3, 2, hidden_dim)
    b = jnp.zeros((1, 2), dtype=jnp.float32)
    return w1, w2, wl, b


def reference_forward(x, w1, w2, wl, b, compute_dtype=jnp.float32):
    cd = compute_dtype
    prec = jax.lax.Precision.HIGHEST
    h = jnp.dot(x.astype(cd), w1.astype(cd), precision=prec,
                preferred_element_type=jnp.float32)
    h = jnp.maximum(h, 0.0).astype(cd)
    h = jnp.dot(h, w2.astype(cd), precision=prec,
                preferred_element_type=jnp.float32)
    h = jnp.maximum(h, 0.0).astype(cd)
    y = jnp.dot(h, wl.astype(cd), precision=prec,
                preferred_element_type=jnp.float32)
    return y + b.reshape(1, -1).astype(jnp.float32)


if __name__ == "__main__":
    key = jax.random.PRNGKey(0)
    k_x1, k_x2, k_x3, k_b, k_p = jax.random.split(key, 5)

    # Small shapes consistent with the module (cfg: inputDim=32, hiddenDim=32,
    # layerNum=2).
    N, INPUT_DIM, HIDDEN_DIM = 8, 32, 32
    w1, w2, wl, b = init_params(k_p, INPUT_DIM, HIDDEN_DIM)

    # 1) f32 compute path, tiny batch (single exact block).
    x1 = jax.random.normal(k_x1, (N, INPUT_DIM), dtype=jnp.float32)
    p32 = prepare_params(w1, w2, wl, b, compute_dtype=jnp.float32)
    out32 = jax.block_until_ready(discriminator_forward(x1, *p32))
    ref32 = reference_forward(x1, w1, w2, wl, b, compute_dtype=jnp.float32)
    assert out32.shape == (N, 2)
    assert jnp.allclose(out32, ref32, atol=1e-2, rtol=1e-2)

    # 2) bf16 compute path (fast path), ragged small batch (single block).
    N2 = 37
    x2 = jax.random.normal(k_x2, (N2, INPUT_DIM), dtype=jnp.float32)
    pbf = prepare_params(w1, w2, wl, b, compute_dtype=jnp.bfloat16)
    out_bf = jax.block_until_ready(discriminator_forward(x2, *pbf))
    ref_bf = reference_forward(x2, w1, w2, wl, b, compute_dtype=jnp.bfloat16)
    assert out_bf.shape == (N2, 2)
    assert jnp.allclose(out_bf, ref_bf, atol=5e-2, rtol=5e-2)

    # 3) bf16, larger ragged batch: multi-step grid + partial last block,
    #    with a nonzero bias to exercise the bias add.
    N3 = 1337
    b3 = 0.1 * jax.random.normal(k_b, (1, 2), dtype=jnp.float32)
    x3 = jax.random.normal(k_x3, (N3, INPUT_DIM), dtype=jnp.float32)
    pbf3 = prepare_params(w1, w2, wl, b3, compute_dtype=jnp.bfloat16)
    out3 = jax.block_until_ready(discriminator_forward(x3, *pbf3))
    ref3 = reference_forward(x3, w1, w2, wl, b3, compute_dtype=jnp.bfloat16)
    assert out3.shape == (N3, 2)
    assert jnp.allclose(out3, ref3, atol=5e-2, rtol=5e-2)

    print("KERNEL_OK")
</pallas_src>

<mosaic_0001>
module attributes {stable_mosaic.version = 11 : i64} {
  func.func @_disc_kernel(%arg0: i32, %arg1: memref<8x32xf32, #tpu.memory_space<vmem>>, %arg2: memref<32x128xf32, #tpu.memory_space<vmem>>, %arg3: memref<128x128xf32, #tpu.memory_space<vmem>>, %arg4: memref<128x2xf32, #tpu.memory_space<vmem>>, %arg5: memref<1x2xf32, #tpu.memory_space<vmem>>, %arg6: memref<8x2xf32, #tpu.memory_space<vmem>>) attributes {dimension_semantics = [#tpu.dimension_semantics<parallel>], iteration_bounds = array<i64: 1>, scalar_prefetch = 0 : i64, scratch_operands = 0 : i64, tpu.core_type = #tpu.core_type<tc>, window_params = [{transform_indices = @transform_0, window_bounds = array<i64: 8, 32>}, {pipeline_mode = #tpu.pipeline_mode<synchronous>, transform_indices = @transform_1, window_bounds = array<i64: 32, 128>}, {pipeline_mode = #tpu.pipeline_mode<synchronous>, transform_indices = @transform_2, window_bounds = array<i64: 128, 128>}, {pipeline_mode = #tpu.pipeline_mode<synchronous>, transform_indices = @transform_3, window_bounds = array<i64: 128, 2>}, {pipeline_mode = #tpu.pipeline_mode<synchronous>, transform_indices = @transform_4, window_bounds = array<i64: 1, 2>}, {transform_indices = @transform_5, window_bounds = array<i64: 8, 2>}]} {
    %c0 = arith.constant 0 : index
    %c0_0 = arith.constant 0 : index
    %0 = vector.load %arg1[%c0, %c0_0] : memref<8x32xf32, #tpu.memory_space<vmem>>, vector<8x32xf32>
    %c0_1 = arith.constant 0 : index
    %c0_2 = arith.constant 0 : index
    %1 = vector.load %arg2[%c0_1, %c0_2] : memref<32x128xf32, #tpu.memory_space<vmem>>, vector<32x128xf32>
    %cst = arith.constant dense<0.000000e+00> : vector<8x128xf32>
    %2 = tpu.matmul %0, %1, %cst {dimension_numbers = #tpu.dot_dimension_numbers<[1], [0], [0], [1], [0, 0, 1, 1], [], []>} : vector<8x32xf32>, vector<32x128xf32>, vector<8x128xf32> -> vector<8x128xf32>
    %cst_3 = arith.constant 0.000000e+00 : f32
    %3 = vector.broadcast %cst_3 : f32 to vector<8x128xf32>
    %4 = arith.maximumf %2, %3 : vector<8x128xf32>
    %c0_4 = arith.constant 0 : index
    %c0_5 = arith.constant 0 : index
    %5 = vector.load %arg3[%c0_4, %c0_5] : memref<128x128xf32, #tpu.memory_space<vmem>>, vector<128x128xf32>
    %cst_6 = arith.constant dense<0.000000e+00> : vector<8x128xf32>
    %6 = tpu.matmul %4, %5, %cst_6 {dimension_numbers = #tpu.dot_dimension_numbers<[1], [0], [0], [1], [0, 0, 1, 1], [], []>} : vector<8x128xf32>, vector<128x128xf32>, vector<8x128xf32> -> vector<8x128xf32>
    %cst_7 = arith.constant 0.000000e+00 : f32
    %7 = vector.broadcast %cst_7 : f32 to vector<8x128xf32>
    %8 = arith.maximumf %6, %7 : vector<8x128xf32>
    %c0_8 = arith.constant 0 : index
    %c0_9 = arith.constant 0 : index
    %9 = vector.load %arg4[%c0_8, %c0_9] : memref<128x2xf32, #tpu.memory_space<vmem>>, vector<128x2xf32>
    %cst_10 = arith.constant dense<0.000000e+00> : vector<8x2xf32>
    %10 = tpu.matmul %8, %9, %cst_10 {dimension_numbers = #tpu.dot_dimension_numbers<[1], [0], [0], [1], [0, 0, 1, 1], [], []>} : vector<8x128xf32>, vector<128x2xf32>, vector<8x2xf32> -> vector<8x2xf32>
    %c0_11 = arith.constant 0 : index
    %c0_12 = arith.constant 0 : index
    %11 = vector.load %arg5[%c0_11, %c0_12] : memref<1x2xf32, #tpu.memory_space<vmem>>, vector<1x2xf32>
    %12 = vector.broadcast %11 : vector<1x2xf32> to vector<8x2xf32>
    %13 = arith.addf %10, %12 : vector<8x2xf32>
    %c0_13 = arith.constant 0 : index
    %c0_14 = arith.constant 0 : index
    %14 = vector.load %arg6[%c0_13, %c0_14] : memref<8x2xf32, #tpu.memory_space<vmem>>, vector<8x2xf32>
    tpu.vector_store %arg6[%c0_13, %c0_14], %13 {strides = array<i32>} : memref<8x2xf32, #tpu.memory_space<vmem>>, vector<8x2xf32>,
    return
  }
  func.func @transform_0(%arg0: i32) -> (i32, i32) {
    %c0_i32 = arith.constant 0 : i32
    %c0_i32_0 = arith.constant 0 : i32
    return %arg0, %c0_i32 : i32, i32
  }
  func.func @transform_1(%arg0: i32) -> (i32, i32) {
    %c0_i32 = arith.constant 0 : i32
    %c0_i32_0 = arith.constant 0 : i32
    %c0_i32_1 = arith.constant 0 : i32
    return %c0_i32, %c0_i32_0 : i32, i32
  }
  func.func @transform_2(%arg0: i32) -> (i32, i32) {
    %c0_i32 = arith.constant 0 : i32
    %c0_i32_0 = arith.constant 0 : i32
    %c0_i32_1 = arith.constant 0 : i32
    return %c0_i32, %c0_i32_0 : i32, i32
  }
  func.func @transform_3(%arg0: i32) -> (i32, i32) {
    %c0_i32 = arith.constant 0 : i32
    %c0_i32_0 = arith.constant 0 : i32
    %c0_i32_1 = arith.constant 0 : i32
    return %c0_i32, %c0_i32_0 : i32, i32
  }
  func.func @transform_4(%arg0: i32) -> (i32, i32) {
    %c0_i32 = arith.constant 0 : i32
    %c0_i32_0 = arith.constant 0 : i32
    %c0_i32_1 = arith.constant 0 : i32
    return %c0_i32, %c0_i32_0 : i32, i32
  }
  func.func @transform_5(%arg0: i32) -> (i32, i32) {
    %c0_i32 = arith.constant 0 : i32
    %c0_i32_0 = arith.constant 0 : i32
    return %arg0, %c0_i32 : i32, i32
  }
}

</mosaic_0001>

<llo_original>
// kernel: tpu_custom_call.1
$region0: #{tpu_custom_call.1}
  #allocation0 [shape = 'u32[]', space=smem, size = 0x4, offset = 0x4, fixed_abs, tag = 'smem constant byte address 0x4 - core index']
  #allocation1 [shape = 'u32[144,128]{1,0:T(1,128)}', space=vmem, size = 0x12000, scoped, tag = 'internal scratch']
  %s0 = inlined_call_operand.vmem [shape: f32[8,32], index: 0, kind: input, shape index: {}]
  %s1 = inlined_call_operand.hbm [shape: f32[32,128], index: 1, kind: input, shape index: {}]
  %s2 = inlined_call_operand.vmem [shape: f32[128,128], index: 2, kind: input, shape index: {}]
  %s3 = inlined_call_operand.vmem [shape: f32[128,2], index: 3, kind: input, shape index: {}]
  %s4 = inlined_call_operand.vmem [shape: f32[1,2], index: 4, kind: input, shape index: {}]
  %s5 = inlined_call_operand.vmem [shape: f32[8,2], index: 5, kind: output, shape index: {}]
  %s6 = sld [smem:[#allocation0]]
  $region34: #{tpu_custom_call.1} parent=0
    _
  %s8 = ssub.s32 1, %s6
  %s9 = scalar_select 0, %s8, %s6
  $region1: #{tpu_custom_call.1} parent=0
    #allocation2 [shape = 'u8[16384]{0}', space=vmem, size = 0x4000, scoped, tag = 'input window, operand 1, single buffered']
    #allocation3 [shape = 's32[1]{0}', space=sflag, size = 0x4, scoped, tag = 'scoped memory for tpu_custom_call.1']
    %10 = vsyncpa [#allocation3], 0
    // Predicated region
    $region2: #{tpu_custom_call.1} parent=1 // pred_check
      _
    $region3: #{tpu_custom_call.1} parent=1 // pred_check_branch
      %12 = sbr.rel (0) target = $region5
    $region4: #{tpu_custom_call.1} parent=1 // pred_region
      _
    $region5: #{tpu_custom_call.1} parent=1 // pred_fallthru
      _
    // Predicated region
    $region6: #{tpu_custom_call.1} parent=1 // pred_check
      _
    $region7: #{tpu_custom_call.1} parent=1 // pred_check_branch
      %14 = sbr.rel (0) target = $region9
    $region8: #{tpu_custom_call.1} parent=1 // pred_region
      %s16 = ssub.s32 512, 512
      %17 = vsyncadd [#allocation3], %s16
      %s18 = sshll.u32 [#allocation2], 4
      %s19 = int_to_ptr.vmem [resolvable:$true] %s18
      %24 = dma.hbm_to_vmem [thread:$0]  %s1, 512, %s19, [#allocation3], 128, 128, 8
    $region9: #{tpu_custom_call.1} parent=1 // pred_fallthru
      _
    // Predicated region
    $region10: #{tpu_custom_call.1} parent=1 // pred_check
      _
    $region11: #{tpu_custom_call.1} parent=1 // pred_check_branch
      %26 = sbr.rel (0) target = $region13
    $region12: #{tpu_custom_call.1} parent=1 // pred_region
      _
    $region13: #{tpu_custom_call.1} parent=1 // pred_fallthru
      _
    // Predicated region
    $region14: #{tpu_custom_call.1} parent=1 // pred_check
      _
    $region15: #{tpu_custom_call.1} parent=1 // pred_check_branch
      %28 = sbr.rel (0) target = $region17
    $region16: #{tpu_custom_call.1} parent=1 // pred_region
      _
    $region17: #{tpu_custom_call.1} parent=1 // pred_fallthru
      _
    // Predicated region
    $region18: #{tpu_custom_call.1} parent=1 // pred_check
      _
    $region19: #{tpu_custom_call.1} parent=1 // pred_check_branch
      %30 = sbr.rel (0) target = $region21
    $region20: #{tpu_custom_call.1} parent=1 // pred_region
      _
    $region21: #{tpu_custom_call.1} parent=1 // pred_fallthru
      _
    // Predicated region
    $region22: #{tpu_custom_call.1} parent=1 // pred_check
      _
    $region23: #{tpu_custom_call.1} parent=1 // pred_check_branch
      %32 = sbr.rel (0) target = $region25
    $region24: #{tpu_custom_call.1} parent=1 // pred_region
      %33 = dma.done [#allocation3], 512
    $region25: #{tpu_custom_call.1} parent=1 // pred_fallthru
      _
    %v34 = vld [vmem:[%s0] sm:$0xff]
    %v35 = vld [vmem:[#allocation2] sm:$0xff]
    %v36 = vld [vmem:[#allocation2 + $0x8] sm:$0xff]
    %v37 = vld [vmem:[#allocation2 + $0x10] sm:$0xff]
    %v38 = vld [vmem:[#allocation2 + $0x18] sm:$0xff]
    %vm39 = vcmask 261120
    %v41 = vsel %vm39, %v34, 0
    %43 = vmatprep.subr.mxu0 0.0
    %44 = vmatpush1.msra.mxu0 %v35
    %45 = vmatprep.subr.mxu0 0.0
    %46 = vmatpush1.msra.mxu0 %v36
    %47 = vmatprep.subr.mxu0 0.0
    %48 = vmatpush1.msra.mxu0 %v37
    %49 = vmatprep.subr.mxu0 0.0
    %50 = vmatpush1.msra.mxu0 %v38
    %51 = vmatprep.subr.mxu0 0.0
    %52 = vmatpush1.msra.mxu0 0.0
    %53 = vmatprep.subr.mxu0 0.0
    %54 = vmatpush1.msra.mxu0 0.0
    %55 = vmatprep.subr.mxu0 0.0
    %56 = vmatpush1.msra.mxu0 0.0
    %57 = vmatprep.subr.mxu0 0.0
    %58 = vmatpush1.msra.mxu0 0.0
    %59 = vmatprep.subr.mxu0 0.0
    %60 = vmatpush1.msra.mxu0 0.0
    %61 = vmatprep.subr.mxu0 0.0
    %62 = vmatpush1.msra.mxu0 0.0
    %63 = vmatprep.subr.mxu0 0.0
    %64 = vmatpush1.msra.mxu0 0.0
    %65 = vmatprep.subr.mxu0 0.0
    %66 = vmatpush1.msra.mxu0 0.0
    %67 = vmatprep.subr.mxu0 0.0
    %68 = vmatpush1.msra.mxu0 0.0
    %69 = vmatprep.subr.mxu0 0.0
    %70 = vmatpush1.msra.mxu0 0.0
    %71 = vmatprep.subr.mxu0 0.0
    %72 = vmatpush1.msra.mxu0 0.0
    %73 = vmatprep.subr.mxu0 0.0
    %74 = vmatpush1.msra.mxu0 0.0
    %75 = vmatprep.subr.mxu0 0.0
    %76 = vmatpush1.msra.mxu0 0.0
    %77 = vmatprep.subr.mxu0 0.0
    %78 = vmatpush1.msra.mxu0 0.0
    %79 = vmatprep.subr.mxu0 0.0
    %80 = vmatpush1.msra.mxu0 0.0
    %81 = vmatprep.subr.mxu0 0.0
    %82 = vmatpush1.msra.mxu0 0.0
    %83 = vmatprep.subr.mxu0 0.0
    %84 = vmatpush1.msra.mxu0 0.0
    %85 = vmatprep.subr.mxu0 0.0
    %86 = vmatpush1.msra.mxu0 0.0
    %87 = vmatprep.subr.mxu0 0.0
    %88 = vmatpush1.msra.mxu0 0.0
    %89 = vmatprep.subr.mxu0 0.0
    %90 = vmatpush1.msra.mxu0 0.0
    %91 = vmatprep.subr.mxu0 0.0
    %92 = vmatpush1.msra.mxu0 0.0
    %93 = vmatprep.subr.mxu0 0.0
    %94 = vmatpush1.msra.mxu0 0.0
    %95 = vmatprep.subr.mxu0 0.0
    %96 = vmatpush1.msra.mxu0 0.0
    %97 = vmatprep.subr.mxu0 0.0
    %98 = vmatpush1.msra.mxu0 0.0
    %99 = vmatprep.subr.mxu0 0.0
    %100 = vmatpush1.msra.mxu0 0.0
    %101 = vmatprep.subr.mxu0 0.0
    %102 = vmatpush1.msra.mxu0 0.0
    %103 = vmatprep.subr.mxu0 0.0
    %104 = vmatpush1.msra.mxu0 0.0
    %105 = vmatprep.subr.mxu0 0.0
    %106 = vmatpush1.msra.mxu0 0.0
    %107 = vmatprep.mubr.f32.mxu0 0.0
    %108 = vmatmul.mubr.f32.gmra.mrb[0].mxu0 %v41
    %v109 = vpop.f32.mrb[0].mxu0
    %v110 = vadd.f32 0.0, %v109
    %v111 = vpop.f32.mrb[0].mxu0
    %112 = vdwg.mxu0
    %v113 = vmax.f32 %v110, 0.0
    %v114 = vld [vmem:[%s2] sm:$0xff]
    %v115 = vld [vmem:[%s2 + $0x8] sm:$0xff]
    %v116 = vld [vmem:[%s2 + $0x10] sm:$0xff]
    %v117 = vld [vmem:[%s2 + $0x18] sm:$0xff]
    %v118 = vld [vmem:[%s2 + $0x20] sm:$0xff]
    %v119 = vld [vmem:[%s2 + $0x28] sm:$0xff]
    %v120 = vld [vmem:[%s2 + $0x30] sm:$0xff]
    %v121 = vld [vmem:[%s2 + $0x38] sm:$0xff]
    %v122 = vld [vmem:[%s2 + $0x40] sm:$0xff]
    %v123 = vld [vmem:[%s2 + $0x48] sm:$0xff]
    %v124 = vld [vmem:[%s2 + $0x50] sm:$0xff]
    %v125 = vld [vmem:[%s2 + $0x58] sm:$0xff]
    %v126 = vld [vmem:[%s2 + $0x60] sm:$0xff]
    %v127 = vld [vmem:[%s2 + $0x68] sm:$0xff]
    %v128 = vld [vmem:[%s2 + $0x70] sm:$0xff]
    %v129 = vld [vmem:[%s2 + $0x78] sm:$0xff]
    %130 = vmatprep.subr.mxu0 0.0
    %131 = vmatpush1.msra.mxu0 %v114
    %132 = vmatprep.subr.mxu0 0.0
    %133 = vmatpush1.msra.mxu0 %v115
    %134 = vmatprep.subr.mxu0 0.0
    %135 = vmatpush1.msra.mxu0 %v116
    %136 = vmatprep.subr.mxu0 0.0
    %137 = vmatpush1.msra.mxu0 %v117
    %138 = vmatprep.subr.mxu0 0.0
    %139 = vmatpush1.msra.mxu0 %v118
    %140 = vmatprep.subr.mxu0 0.0
    %141 = vmatpush1.msra.mxu0 %v119
    %142 = vmatprep.subr.mxu0 0.0
    %143 = vmatpush1.msra.mxu0 %v120
    %144 = vmatprep.subr.mxu0 0.0
    %145 = vmatpush1.msra.mxu0 %v121
    %146 = vmatprep.subr.mxu0 0.0
    %147 = vmatpush1.msra.mxu0 %v122
    %148 = vmatprep.subr.mxu0 0.0
    %149 = vmatpush1.msra.mxu0 %v123
    %150 = vmatprep.subr.mxu0 0.0
    %151 = vmatpush1.msra.mxu0 %v124
    %152 = vmatprep.subr.mxu0 0.0
    %153 = vmatpush1.msra.mxu0 %v125
    %154 = vmatprep.subr.mxu0 0.0
    %155 = vmatpush1.msra.mxu0 %v126
    %156 = vmatprep.subr.mxu0 0.0
    %157 = vmatpush1.msra.mxu0 %v127
    %158 = vmatprep.subr.mxu0 0.0
    %159 = vmatpush1.msra.mxu0 %v128
    %160 = vmatprep.subr.mxu0 0.0
    %161 = vmatpush1.msra.mxu0 %v129
    %162 = vmatprep.subr.mxu0 0.0
    %163 = vmatpush1.msra.mxu0 0.0
    %164 = vmatprep.subr.mxu0 0.0
    %165 = vmatpush1.msra.mxu0 0.0
    %166 = vmatprep.subr.mxu0 0.0
    %167 = vmatpush1.msra.mxu0 0.0
    %168 = vmatprep.subr.mxu0 0.0
    %169 = vmatpush1.msra.mxu0 0.0
    %170 = vmatprep.subr.mxu0 0.0
    %171 = vmatpush1.msra.mxu0 0.0
    %172 = vmatprep.subr.mxu0 0.0
    %173 = vmatpush1.msra.mxu0 0.0
    %174 = vmatprep.subr.mxu0 0.0
    %175 = vmatpush1.msra.mxu0 0.0
    %176 = vmatprep.subr.mxu0 0.0
    %177 = vmatpush1.msra.mxu0 0.0
    %178 = vmatprep.subr.mxu0 0.0
    %179 = vmatpush1.msra.mxu0 0.0
    %180 = vmatprep.subr.mxu0 0.0
    %181 = vmatpush1.msra.mxu0 0.0
    %182 = vmatprep.subr.mxu0 0.0
    %183 = vmatpush1.msra.mxu0 0.0
    %184 = vmatprep.subr.mxu0 0.0
    %185 = vmatpush1.msra.mxu0 0.0
    %186 = vmatprep.subr.mxu0 0.0
    %187 = vmatpush1.msra.mxu0 0.0
    %188 = vmatprep.subr.mxu0 0.0
    %189 = vmatpush1.msra.mxu0 0.0
    %190 = vmatprep.subr.mxu0 0.0
    %191 = vmatpush1.msra.mxu0 0.0
    %192 = vmatprep.subr.mxu0 0.0
    %193 = vmatpush1.msra.mxu0 0.0
    %194 = vmatprep.mubr.f32.mxu0 0.0
    %195 = vmatmul.mubr.f32.gmra.mrb[0].mxu0 %v113
    %v196 = vpop.f32.mrb[0].mxu0
    %v197 = vadd.f32 0.0, %v196
    %v198 = vpop.f32.mrb[0].mxu0
    %199 = vdwg.mxu0
    %v200 = vmax.f32 %v197, 0.0
    %v201 = vld [vmem:[%s3] sm:$0xff]
    %v202 = vld [vmem:[%s3 + $0x8] sm:$0xff]
    %v203 = vld [vmem:[%s3 + $0x10] sm:$0xff]
    %v204 = vld [vmem:[%s3 + $0x18] sm:$0xff]
    %v205 = vld [vmem:[%s3 + $0x20] sm:$0xff]
    %v206 = vld [vmem:[%s3 + $0x28] sm:$0xff]
    %v207 = vld [vmem:[%s3 + $0x30] sm:$0xff]
    %v208 = vld [vmem:[%s3 + $0x38] sm:$0xff]
    %v209 = vld [vmem:[%s3 + $0x40] sm:$0xff]
    %v210 = vld [vmem:[%s3 + $0x48] sm:$0xff]
    %v211 = vld [vmem:[%s3 + $0x50] sm:$0xff]
    %v212 = vld [vmem:[%s3 + $0x58] sm:$0xff]
    %v213 = vld [vmem:[%s3 + $0x60] sm:$0xff]
    %v214 = vld [vmem:[%s3 + $0x68] sm:$0xff]
    %v215 = vld [vmem:[%s3 + $0x70] sm:$0xff]
    %v216 = vld [vmem:[%s3 + $0x78] sm:$0xff]
    %v217 = vld [vmem:[%s4] sm:$0x1]
    %v219 = vlaneseq
    %v220 = vshrl.u32 %v219, 7
    %v221 = vsub.s32 0, %v220
    %v222 = vrot.slane %v217, %v221
    %224 = vmatprep.subr.mxu0 0.0
    %225 = vmatpush1.msra.mxu0 %v201
    %226 = vmatprep.subr.mxu0 0.0
    %227 = vmatpush1.msra.mxu0 %v202
    %228 = vmatprep.subr.mxu0 0.0
    %229 = vmatpush1.msra.mxu0 %v203
    %230 = vmatprep.subr.mxu0 0.0
    %231 = vmatpush1.msra.mxu0 %v204
    %232 = vmatprep.subr.mxu0 0.0
    %233 = vmatpush1.msra.mxu0 %v205
    %234 = vmatprep.subr.mxu0 0.0
    %235 = vmatpush1.msra.mxu0 %v206
    %236 = vmatprep.subr.mxu0 0.0
    %237 = vmatpush1.msra.mxu0 %v207
    %238 = vmatprep.subr.mxu0 0.0
    %239 = vmatpush1.msra.mxu0 %v208
    %240 = vmatprep.subr.mxu0 0.0
    %241 = vmatpush1.msra.mxu0 %v209
    %242 = vmatprep.subr.mxu0 0.0
    %243 = vmatpush1.msra.mxu0 %v210
    %244 = vmatprep.subr.mxu0 0.0
    %245 = vmatpush1.msra.mxu0 %v211
    %246 = vmatprep.subr.mxu0 0.0
    %247 = vmatpush1.msra.mxu0 %v212
    %248 = vmatprep.subr.mxu0 0.0
    %249 = vmatpush1.msra.mxu0 %v213
    %250 = vmatprep.subr.mxu0 0.0
    %251 = vmatpush1.msra.mxu0 %v214
    %252 = vmatprep.subr.mxu0 0.0
    %253 = vmatpush1.msra.mxu0 %v215
    %254 = vmatprep.subr.mxu0 0.0
    %255 = vmatpush1.msra.mxu0 %v216
    %256 = vmatprep.subr.mxu0 0.0
    %257 = vmatpush1.msra.mxu0 0.0
    %258 = vmatprep.subr.mxu0 0.0
    %259 = vmatpush1.msra.mxu0 0.0
    %260 = vmatprep.subr.mxu0 0.0
    %261 = vmatpush1.msra.mxu0 0.0
    %262 = vmatprep.subr.mxu0 0.0
    %263 = vmatpush1.msra.mxu0 0.0
    %264 = vmatprep.subr.mxu0 0.0
    %265 = vmatpush1.msra.mxu0 0.0
    %266 = vmatprep.subr.mxu0 0.0
    %267 = vmatpush1.msra.mxu0 0.0
    %268 = vmatprep.subr.mxu0 0.0
    %269 = vmatpush1.msra.mxu0 0.0
    %270 = vmatprep.subr.mxu0 0.0
    %271 = vmatpush1.msra.mxu0 0.0
    %272 = vmatprep.subr.mxu0 0.0
    %273 = vmatpush1.msra.mxu0 0.0
    %274 = vmatprep.subr.mxu0 0.0
    %275 = vmatpush1.msra.mxu0 0.0
    %276 = vmatprep.subr.mxu0 0.0
    %277 = vmatpush1.msra.mxu0 0.0
    %278 = vmatprep.subr.mxu0 0.0
    %279 = vmatpush1.msra.mxu0 0.0
    %280 = vmatprep.subr.mxu0 0.0
    %281 = vmatpush1.msra.mxu0 0.0
    %282 = vmatprep.subr.mxu0 0.0
    %283 = vmatpush1.msra.mxu0 0.0
    %284 = vmatprep.subr.mxu0 0.0
    %285 = vmatpush1.msra.mxu0 0.0
    %286 = vmatprep.subr.mxu0 0.0
    %287 = vmatpush1.msra.mxu0 0.0
    %288 = vmatprep.mubr.f32.mxu0 0.0
    %289 = vmatmul.mubr.f32.gmra.mrb[0].mxu0 %v200
    %v290 = vpop.f32.mrb[0].mxu0
    %v291 = vadd.f32 %v222, %v290
    %v292 = vpop.f32.mrb[0].mxu0
    %293 = vdwg.mxu0
    %vm294 = vcmask 15360
    %295 = vst.msk [vmem:[%s5] sm:$0xff] %vm294, %v291
    // Predicated region
    $region26: #{tpu_custom_call.1} parent=1 // pred_check
      _
    $region27: #{tpu_custom_call.1} parent=1 // pred_check_branch
      %297 = sbr.rel (0) target = $region29
    $region28: #{tpu_custom_call.1} parent=1 // pred_region
      _
    $region29: #{tpu_custom_call.1} parent=1 // pred_fallthru
      _
    // Predicated region
    $region30: #{tpu_custom_call.1} parent=1 // pred_check
      _
    $region31: #{tpu_custom_call.1} parent=1 // pred_check_branch
      %299 = sbr.rel (0) target = $region33
    $region32: #{tpu_custom_call.1} parent=1 // pred_region
      _
    $region33: #{tpu_custom_call.1} parent=1 // pred_fallthru
      _
    %300 = vsyncpa [#allocation3], 1

</llo_original>
